<compile_context>
chip_gen: v6e
topology: v6e:2x2x1
jax: 0.10.0
libtpu: 0.0.40
codegen_flags: <defaults>
</compile_context>

<pallas_src>
import math

import jax
import jax.numpy as jnp
from jax.experimental import pallas as pl
from jax.experimental.pallas import tpu as pltpu

MID_CHANNEL = 1024       # fixed by the module
_BF16_SUBLANE = 16       # bf16 packs 16 rows per sublane group


def _round_up(n, m):
    return ((n + m - 1) // m) * m


def _choose_tb(B, block_b):
    """Batch tile: >=2 grid steps when B allows (v7x megacore), 16-row aligned."""
    tb = min(block_b, _round_up(max((B + 1) // 2, 1), _BF16_SUBLANE))
    if tb >= B:
        # Single grid step: shrink to the smallest legal block covering B.
        tb = B if (B < 8 or B % 8 == 0) else _round_up(B, 8)
    return tb


# ---------------------------------------------------------------------------
# Kernels
# ---------------------------------------------------------------------------
def _fused_kernel(x_ref, w_ref, b_ref, o_ref):
    # In-kernel cast of the f32 x tile to the matmul dtype (free: VPU has
    # slack; avoids a separate HBM pass for the cast in the wrapper).
    x = x_ref[...].astype(w_ref.dtype)
    y = jnp.dot(x, w_ref[...], preferred_element_type=jnp.float32)
    o_ref[...] = (y + b_ref[...]).astype(o_ref.dtype)


def _two_stage_kernel(x_ref, w1_ref, b1_ref, w2_ref, b2_ref, o_ref):
    # Both matmuls in one kernel: the (tb, 1024) intermediate never touches HBM.
    x = x_ref[...].astype(w1_ref.dtype)
    h = jnp.dot(x, w1_ref[...], preferred_element_type=jnp.float32) + b1_ref[...]
    y = jnp.dot(h.astype(w2_ref.dtype), w2_ref[...],
                preferred_element_type=jnp.float32) + b2_ref[...]
    o_ref[...] = y.astype(o_ref.dtype)


# ---------------------------------------------------------------------------
# Wrapper
# ---------------------------------------------------------------------------
def prepare_params(w1, b1, w2, b2, *, use_bf16=True, fuse=None):
    """Pre-fuse / pre-cast weights. For inference, call once and reuse.

    Fusion is exact (no nonlinearity between fc1 and fc2) but is only applied
    when it reduces weight bytes/FLOPs and the fused slab fits VMEM.
    Note: the bf16 path quantizes the fused W_eff; for very large Cin the
    single K=Cin bf16 dot drifts more than quantizing W1/W2 separately.
    """
    Cin = w1.shape[0]
    Cout = w2.shape[1]
    mm_dtype = jnp.bfloat16 if use_bf16 else jnp.float32
    itemsize = 2 if use_bf16 else 4

    if fuse is None:
        smaller = Cin * Cout < MID_CHANNEL * (Cin + Cout)   # fewer weight elems
        fits = Cin * Cout * itemsize <= 24 * (1 << 20)      # conservative for v7x
        fuse = smaller and fits

    hp = jax.lax.Precision.HIGHEST
    if fuse:
        w_eff = jnp.dot(w1.astype(jnp.float32), w2.astype(jnp.float32),
                        precision=hp)
        b_eff = jnp.dot(b1.astype(jnp.float32), w2.astype(jnp.float32),
                        precision=hp) + b2.astype(jnp.float32)
        return ("fused", w_eff.astype(mm_dtype), b_eff)
    return ("two_stage",
            w1.astype(mm_dtype), b1.astype(jnp.float32),
            w2.astype(mm_dtype), b2.astype(jnp.float32))


def linear_projection_apply(x, params, *, block_b=512, out_dtype=None):
    B, Cin = x.shape
    out_dtype = x.dtype if out_dtype is None else out_dtype
    out_itemsize = jnp.dtype(out_dtype).itemsize

    tb = _choose_tb(B, block_b)
    grid = (pl.cdiv(B, tb),)   # ragged last block handled by Pallas masking

    if params[0] == "fused":
        _, w_eff, b_eff = params
        Cout = w_eff.shape[1]
        kernel = _fused_kernel
        in_specs = [
            pl.BlockSpec((tb, Cin), lambda i: (i, 0)),        # batch-tiled x
            pl.BlockSpec((Cin, Cout), lambda i: (0, 0)),      # resident weight
            pl.BlockSpec((1, Cout), lambda i: (0, 0)),        # resident bias
        ]
        operands = (x, w_eff, b_eff)
        weight_bytes = w_eff.size * w_eff.dtype.itemsize + b_eff.size * 4
        mid_bytes = 0
    else:
        _, w1, b1, w2, b2 = params
        Cout = w2.shape[1]
        kernel = _two_stage_kernel
        in_specs = [
            pl.BlockSpec((tb, Cin), lambda i: (i, 0)),
            pl.BlockSpec((Cin, MID_CHANNEL), lambda i: (0, 0)),
            pl.BlockSpec((1, MID_CHANNEL), lambda i: (0, 0)),
            pl.BlockSpec((MID_CHANNEL, Cout), lambda i: (0, 0)),
            pl.BlockSpec((1, Cout), lambda i: (0, 0)),
        ]
        operands = (x, w1, b1, w2, b2)
        weight_bytes = (w1.size * w1.dtype.itemsize + w2.size * w2.dtype.itemsize
                        + (b1.size + b2.size) * 4)
        mid_bytes = tb * MID_CHANNEL * 4   # f32 intermediate kept on-chip

    # Explicit VMEM budget: resident weights + double-buffered x / out tiles
    # + intermediate, with headroom.  Capped below v7x's 64 MiB physical.
    need = (weight_bytes
            + 2 * tb * Cin * x.dtype.itemsize
            + 2 * tb * Cout * out_itemsize
            + mid_bytes)
    vmem_limit = int(min(max(int(need * 1.5) + (2 << 20), 32 << 20), 60 << 20))
    # TODO(synk): for Cin or Cout >= ~4K add a Cout grid axis (weight block
    # (Cin, tn), bias (1, tn), "parallel") and/or a K-reduction axis with a
    # VMEM accumulator so the resident slab stays within v7x's 64 MiB VMEM.

    return pl.pallas_call(
        kernel,
        out_shape=jax.ShapeDtypeStruct((B, Cout), out_dtype),
        grid=grid,
        in_specs=in_specs,
        out_specs=pl.BlockSpec((tb, Cout), lambda i: (i, 0)),
        compiler_params=pltpu.CompilerParams(
            dimension_semantics=("parallel",),   # batch tiles independent
            vmem_limit_bytes=vmem_limit,
        ),
    )(*operands)


def linear_projection(x, w1, b1, w2, b2, *, use_bf16=True, fuse=None,
                      block_b=512, out_dtype=None):
    """y = fc2(fc1(x)).  For inference, hoist prepare_params out of the loop."""
    params = prepare_params(w1, b1, w2, b2, use_bf16=use_bf16, fuse=fuse)
    return linear_projection_apply(x, params, block_b=block_b,
                                   out_dtype=out_dtype)


def init_linear_params(key, in_features, out_features, dtype=jnp.float32):
    """Deterministic init matching nn.Linear: U(-1/sqrt(in), 1/sqrt(in)).
    Weight returned as (in_features, out_features) (transposed vs. PyTorch)."""
    kw, kb = jax.random.split(key)
    bound = 1.0 / math.sqrt(in_features)
    w = jax.random.uniform(kw, (in_features, out_features), dtype, -bound, bound)
    b = jax.random.uniform(kb, (1, out_features), dtype, -bound, bound)
    return w, b


if __name__ == "__main__":
    key = jax.random.PRNGKey(0)
    k_x, k_fc1, k_fc2 = jax.random.split(key, 3)

    batch = 8
    in_channel = 32
    out_channel = 16

    x = jax.random.normal(k_x, (batch, in_channel), jnp.float32)
    w1, b1 = init_linear_params(k_fc1, in_channel, MID_CHANNEL)
    w2, b2 = init_linear_params(k_fc2, MID_CHANNEL, out_channel)

    # Reference: the original two-matmul forward in full-precision f32.
    hp = jax.lax.Precision.HIGHEST
    y_ref = jnp.dot(jnp.dot(x, w1, precision=hp) + b1, w2, precision=hp) + b2

    # 1) f32-operand fused path (auto-selected at these shapes): tight tolerance.
    y_f32 = jax.block_until_ready(
        linear_projection(x, w1, b1, w2, b2, use_bf16=False))
    assert y_f32.shape == (batch, out_channel)
    assert jnp.allclose(y_f32, y_ref, atol=1e-3, rtol=1e-3)

    # 2) bf16-operand fused path (default, fastest on v6e/v7x): looser tolerance.
    y_bf16 = jax.block_until_ready(linear_projection(x, w1, b1, w2, b2))
    assert y_bf16.shape == (batch, out_channel)
    assert jnp.allclose(y_bf16, y_ref, atol=5e-2, rtol=5e-2)

    # 3) two-stage kernel (the path taken for large Cin/Cout), forced here at
    #    small shapes for coverage.
    y_two = jax.block_until_ready(
        linear_projection(x, w1, b1, w2, b2, use_bf16=False, fuse=False))
    assert y_two.shape == (batch, out_channel)
    assert jnp.allclose(y_two, y_ref, atol=1e-3, rtol=1e-3)

    print("KERNEL_OK")
</pallas_src>

<mosaic_0001>
module attributes {stable_mosaic.version = 11 : i64} {
  func.func @_fused_kernel(%arg0: i32, %arg1: memref<8x32xf32, #tpu.memory_space<vmem>>, %arg2: memref<32x16xf32, #tpu.memory_space<vmem>>, %arg3: memref<1x16xf32, #tpu.memory_space<vmem>>, %arg4: memref<8x16xf32, #tpu.memory_space<vmem>>) attributes {dimension_semantics = [#tpu.dimension_semantics<parallel>], iteration_bounds = array<i64: 1>, scalar_prefetch = 0 : i64, scratch_operands = 0 : i64, tpu.core_type = #tpu.core_type<tc>, window_params = [{transform_indices = @transform_0, window_bounds = array<i64: 8, 32>}, {pipeline_mode = #tpu.pipeline_mode<synchronous>, transform_indices = @transform_1, window_bounds = array<i64: 32, 16>}, {pipeline_mode = #tpu.pipeline_mode<synchronous>, transform_indices = @transform_2, window_bounds = array<i64: 1, 16>}, {transform_indices = @transform_3, window_bounds = array<i64: 8, 16>}]} {
    %c0 = arith.constant 0 : index
    %c0_0 = arith.constant 0 : index
    %0 = vector.load %arg1[%c0, %c0_0] : memref<8x32xf32, #tpu.memory_space<vmem>>, vector<8x32xf32>
    %c0_1 = arith.constant 0 : index
    %c0_2 = arith.constant 0 : index
    %1 = vector.load %arg2[%c0_1, %c0_2] : memref<32x16xf32, #tpu.memory_space<vmem>>, vector<32x16xf32>
    %cst = arith.constant dense<0.000000e+00> : vector<8x16xf32>
    %2 = tpu.matmul %0, %1, %cst {dimension_numbers = #tpu.dot_dimension_numbers<[1], [0], [0], [1], [0, 0, 1, 1], [], []>} : vector<8x32xf32>, vector<32x16xf32>, vector<8x16xf32> -> vector<8x16xf32>
    %c0_3 = arith.constant 0 : index
    %c0_4 = arith.constant 0 : index
    %3 = vector.load %arg3[%c0_3, %c0_4] : memref<1x16xf32, #tpu.memory_space<vmem>>, vector<1x16xf32>
    %4 = vector.broadcast %3 : vector<1x16xf32> to vector<8x16xf32>
    %5 = arith.addf %2, %4 : vector<8x16xf32>
    %c0_5 = arith.constant 0 : index
    %c0_6 = arith.constant 0 : index
    %6 = vector.load %arg4[%c0_5, %c0_6] : memref<8x16xf32, #tpu.memory_space<vmem>>, vector<8x16xf32>
    tpu.vector_store %arg4[%c0_5, %c0_6], %5 {strides = array<i32>} : memref<8x16xf32, #tpu.memory_space<vmem>>, vector<8x16xf32>,
    return
  }
  func.func @transform_0(%arg0: i32) -> (i32, i32) {
    %c0_i32 = arith.constant 0 : i32
    %c0_i32_0 = arith.constant 0 : i32
    return %arg0, %c0_i32 : i32, i32
  }
  func.func @transform_1(%arg0: i32) -> (i32, i32) {
    %c0_i32 = arith.constant 0 : i32
    %c0_i32_0 = arith.constant 0 : i32
    %c0_i32_1 = arith.constant 0 : i32
    return %c0_i32, %c0_i32_0 : i32, i32
  }
  func.func @transform_2(%arg0: i32) -> (i32, i32) {
    %c0_i32 = arith.constant 0 : i32
    %c0_i32_0 = arith.constant 0 : i32
    %c0_i32_1 = arith.constant 0 : i32
    return %c0_i32, %c0_i32_0 : i32, i32
  }
  func.func @transform_3(%arg0: i32) -> (i32, i32) {
    %c0_i32 = arith.constant 0 : i32
    %c0_i32_0 = arith.constant 0 : i32
    return %arg0, %c0_i32 : i32, i32
  }
}

</mosaic_0001>

<llo_original>
// kernel: tpu_custom_call.1
$region0: #{tpu_custom_call.1}
  #allocation0 [shape = 'u32[]', space=smem, size = 0x4, offset = 0x4, fixed_abs, tag = 'smem constant byte address 0x4 - core index']
  #allocation1 [shape = 'u32[144,128]{1,0:T(1,128)}', space=vmem, size = 0x12000, scoped, tag = 'internal scratch']
  %s0 = inlined_call_operand.vmem [shape: f32[8,32], index: 0, kind: input, shape index: {}]
  %s1 = inlined_call_operand.vmem [shape: f32[32,16], index: 1, kind: input, shape index: {}]
  %s2 = inlined_call_operand.vmem [shape: f32[1,16], index: 2, kind: input, shape index: {}]
  %s3 = inlined_call_operand.hbm [shape: f32[8,16], index: 3, kind: output, shape index: {}]
  %s4 = sld [smem:[#allocation0]]
  $region22: #{tpu_custom_call.1} parent=0
    _
  %s6 = ssub.s32 1, %s4
  %s7 = scalar_select 0, %s6, %s4
  $region1: #{tpu_custom_call.1} parent=0
    #allocation2 [shape = 'u8[4096]{0}', space=vmem, size = 0x1000, scoped, tag = 'output window, operand 0, single buffered']
    #allocation3 [shape = 's32[1]{0}', space=sflag, size = 0x4, scoped, tag = 'scoped memory for tpu_custom_call.1']
    %8 = vsyncpa [#allocation3], 0
    // Predicated region
    $region2: #{tpu_custom_call.1} parent=1 // pred_check
      _
    $region3: #{tpu_custom_call.1} parent=1 // pred_check_branch
      %10 = sbr.rel (0) target = $region5
    $region4: #{tpu_custom_call.1} parent=1 // pred_region
      _
    $region5: #{tpu_custom_call.1} parent=1 // pred_fallthru
      _
    // Predicated region
    $region6: #{tpu_custom_call.1} parent=1 // pred_check
      _
    $region7: #{tpu_custom_call.1} parent=1 // pred_check_branch
      %12 = sbr.rel (0) target = $region9
    $region8: #{tpu_custom_call.1} parent=1 // pred_region
      _
    $region9: #{tpu_custom_call.1} parent=1 // pred_fallthru
      _
    // Predicated region
    $region10: #{tpu_custom_call.1} parent=1 // pred_check
      _
    $region11: #{tpu_custom_call.1} parent=1 // pred_check_branch
      %14 = sbr.rel (0) target = $region13
    $region12: #{tpu_custom_call.1} parent=1 // pred_region
      _
    $region13: #{tpu_custom_call.1} parent=1 // pred_fallthru
      _
    %v15 = vld [vmem:[%s0] sm:$0xff]
    %v16 = vld [vmem:[%s1] sm:$0xff]
    %v17 = vld [vmem:[%s1 + $0x8] sm:$0xff]
    %v18 = vld [vmem:[%s1 + $0x10] sm:$0xff]
    %v19 = vld [vmem:[%s1 + $0x18] sm:$0xff]
    %v20 = vld [vmem:[%s2] sm:$0x1]
    %v22 = vlaneseq
    %v23 = vshrl.u32 %v22, 7
    %v24 = vsub.s32 0, %v23
    %v25 = vrot.slane %v20, %v24
    %vm27 = vcmask 261120
    %v29 = vsel %vm27, %v15, 0
    %31 = vmatprep.subr.mxu0 0.0
    %32 = vmatpush1.msra.mxu0 0.0
    %33 = vmatprep.subr.mxu0 0.0
    %34 = vmatpush1.msra.mxu0 0.0
    %35 = vmatprep.subr.mxu0 0.0
    %36 = vmatpush1.msra.mxu0 0.0
    %37 = vmatprep.subr.mxu0 0.0
    %38 = vmatpush1.msra.mxu0 0.0
    %39 = vmatprep.subr.mxu0 0.0
    %40 = vmatpush1.msra.mxu0 0.0
    %41 = vmatprep.subr.mxu0 0.0
    %42 = vmatpush1.msra.mxu0 0.0
    %43 = vmatprep.subr.mxu0 0.0
    %44 = vmatpush1.msra.mxu0 0.0
    %45 = vmatprep.subr.mxu0 0.0
    %46 = vmatpush1.msra.mxu0 0.0
    %47 = vmatprep.subr.mxu0 0.0
    %48 = vmatpush1.msra.mxu0 0.0
    %49 = vmatprep.subr.mxu0 0.0
    %50 = vmatpush1.msra.mxu0 0.0
    %51 = vmatprep.subr.mxu0 0.0
    %52 = vmatpush1.msra.mxu0 0.0
    %53 = vmatprep.subr.mxu0 0.0
    %54 = vmatpush1.msra.mxu0 0.0
    %55 = vmatprep.subr.mxu0 0.0
    %56 = vmatpush1.msra.mxu0 %v19
    %57 = vmatprep.subr.mxu0 0.0
    %58 = vmatpush1.msra.mxu0 %v18
    %59 = vmatprep.subr.mxu0 0.0
    %60 = vmatpush1.msra.mxu0 %v17
    %61 = vmatprep.subr.mxu0 0.0
    %62 = vmatpush1.msra.mxu0 %v16
    %63 = vmatprep.subr.mxu0 0.0
    %64 = vmatpush2.msra.mxu0 0.0
    %65 = vmatprep.subr.mxu0 0.0
    %66 = vmatpush2.msra.mxu0 0.0
    %67 = vmatprep.subr.mxu0 0.0
    %68 = vmatpush2.msra.mxu0 0.0
    %69 = vmatprep.subr.mxu0 0.0
    %70 = vmatpush2.msra.mxu0 0.0
    %71 = vmatprep.subr.mxu0 0.0
    %72 = vmatpush2.msra.mxu0 0.0
    %73 = vmatprep.subr.mxu0 0.0
    %74 = vmatpush2.msra.mxu0 0.0
    %75 = vmatprep.subr.mxu0 0.0
    %76 = vmatpush2.msra.mxu0 0.0
    %77 = vmatprep.subr.mxu0 0.0
    %78 = vmatpush2.msra.mxu0 0.0
    %79 = vmatprep.subr.mxu0 0.0
    %80 = vmatpush2.msra.mxu0 0.0
    %81 = vmatprep.subr.mxu0 0.0
    %82 = vmatpush2.msra.mxu0 0.0
    %83 = vmatprep.subr.mxu0 0.0
    %84 = vmatpush2.msra.mxu0 0.0
    %85 = vmatprep.subr.mxu0 0.0
    %86 = vmatpush2.msra.mxu0 0.0
    %87 = vmatprep.subr.mxu0 0.0
    %88 = vmatpush2.msra.mxu0 0.0
    %89 = vmatprep.subr.mxu0 0.0
    %90 = vmatpush2.msra.mxu0 0.0
    %91 = vmatprep.subr.mxu0 0.0
    %92 = vmatpush2.msra.mxu0 0.0
    %93 = vmatprep.subr.mxu0 0.0
    %94 = vmatpush2.msra.mxu0 0.0
    %95 = vmatprep.mubr.f32.mxu0 0.0
    %96 = vmatmul.mubr.f32.gmra.mxu0 %v29
    %v97 = vpop.f32.mrf.mxu0
    %v98 = vadd.f32 %v25, %v97
    %v99 = vpop.f32.mrf.mxu0
    %100 = vdwg.mxu0
    %vm101 = vcmask 130048
    %102 = vst.msk [vmem:[#allocation2] sm:$0xff] %vm101, %v98
    // Predicated region
    $region14: #{tpu_custom_call.1} parent=1 // pred_check
      _
    $region15: #{tpu_custom_call.1} parent=1 // pred_check_branch
      %104 = sbr.rel (0) target = $region17
    $region16: #{tpu_custom_call.1} parent=1 // pred_region
      %s106 = ssub.s32 128, 128
      %107 = vsyncadd [#allocation3], %s106
      %s109 = sshll.u32 [#allocation2], 4
      %s110 = int_to_ptr.vmem [resolvable:$true] %s109
      %112 = dma.vmem_to_hbm [thread:$0]  %s110, 128, %s3, [#allocation3]
    $region17: #{tpu_custom_call.1} parent=1 // pred_fallthru
      _
    // Predicated region
    $region18: #{tpu_custom_call.1} parent=1 // pred_check
      _
    $region19: #{tpu_custom_call.1} parent=1 // pred_check_branch
      %114 = sbr.rel (0) target = $region21
    $region20: #{tpu_custom_call.1} parent=1 // pred_region
      %115 = dma.done [#allocation3], 128
    $region21: #{tpu_custom_call.1} parent=1 // pred_fallthru
      _
    %116 = vsyncpa [#allocation3], 1

</llo_original>
